<compile_context>
chip_gen: v7x
topology: tpu7x:2x2x1
jax: 0.10.0
libtpu: 0.0.40
codegen_flags: <defaults>
</compile_context>

<pallas_src>
import jax
import jax.numpy as jnp
from jax.experimental import pallas as pl
from jax.experimental.pallas import tpu as pltpu


_LANES = 128
_TARGET_BLOCK_BYTES = 2 << 20  # ~2 MiB x-tile (and out-tile) per pipeline buffer


def _input_norm_kernel(params_ref, x_ref, o_ref):
    # params_ref: (2, L)  row 0 = scale = 1/std, row 1 = bias = -mean/std.
    p = params_ref[...]
    scale = p[0:1, :]          # (1, L) broadcast over rows
    bias = p[1:2, :]           # (1, L)
    o_ref[...] = x_ref[...] * scale + bias


def _pick_tile_rows(n_rows, row_bytes, sublane=8, target_bytes=_TARGET_BLOCK_BYTES):
    """Rows per block: multiple of the sublane pack, ~target_bytes per block,
    and at least 2 grid steps so pipelining / dual-TC sharding can kick in."""
    if n_rows <= sublane:
        return n_rows  # full-extent block is always legal

    def _round_up(v):
        return ((v + sublane - 1) // sublane) * sublane

    t = max(sublane, (target_bytes // max(row_bytes, 1)) // sublane * sublane)
    half = max(sublane, _round_up((n_rows + 1) // 2))  # forces >=2 grid steps
    return int(min(t, half))


def input_norm_reference(x, mean, std):
    """Plain fused XLA path (preferred for tiny inputs)."""
    return (x - mean[None, :]) * (1.0 / std)[None, :]


def input_norm(x, mean, std):
    """Pallas InputNorm: (x - mean) / std with per-feature mean/std.

    x: (N, F); mean, std: (F,). Returns (N, F) in x.dtype.
    """
    N, F = x.shape
    compute_dtype = x.dtype
    itemsize = jnp.dtype(compute_dtype).itemsize
    sublane = 8 * max(1, 4 // itemsize)   # f32 -> 8, bf16 -> 16

    # Per-feature affine params, computed once in f32 glue.
    inv_std = 1.0 / std.astype(jnp.float32)
    bias = (-mean.astype(jnp.float32)) * inv_std

    # Lane-dense layout: fold rows into the 128-lane axis when F divides 128.
    fold = 1
    if F < _LANES and _LANES % F == 0 and (N * F) % _LANES == 0:
        fold = _LANES // F

    if fold > 1:
        L = _LANES
        n_rows = (N * F) // _LANES
        x2 = x.reshape(n_rows, L)               # row-major: fold consecutive rows
        scale_row = jnp.tile(inv_std, fold)     # matches the folded row layout
        bias_row = jnp.tile(bias, fold)
    else:
        L = F
        n_rows = N
        x2 = x
        scale_row = inv_std
        bias_row = bias

    params = jnp.stack([scale_row, bias_row]).astype(compute_dtype)  # (2, L)

    tile_rows = _pick_tile_rows(n_rows, L * itemsize, sublane)
    grid = (pl.cdiv(n_rows, tile_rows),)

    # VMEM budget: 2 pipeline buffers x (x tile + out tile) + params + headroom.
    block_bytes = tile_rows * L * itemsize
    vmem_limit = int(min(max(4 * block_bytes + 2 * L * 4 + (2 << 20), 8 << 20),
                         48 << 20))

    out2 = pl.pallas_call(
        _input_norm_kernel,
        out_shape=jax.ShapeDtypeStruct((n_rows, L), compute_dtype),
        grid_spec=pltpu.PrefetchScalarGridSpec(
            num_scalar_prefetch=0,
            grid=grid,
            in_specs=[
                pl.BlockSpec((2, L), lambda i: (0, 0)),          # fused scale/bias
                pl.BlockSpec((tile_rows, L), lambda i: (i, 0)),  # x row tile
            ],
            out_specs=pl.BlockSpec((tile_rows, L), lambda i: (i, 0)),
        ),
        compiler_params=pltpu.CompilerParams(
            dimension_semantics=("parallel",),
            vmem_limit_bytes=vmem_limit,
        ),
    )(params, x2)

    return out2.reshape(N, F) if fold > 1 else out2


if __name__ == "__main__":
    key = jax.random.PRNGKey(0)

    def run_case(case_key, N, F):
        k_x, k_m, k_s = jax.random.split(case_key, 3)
        x = jax.random.normal(k_x, (N, F), dtype=jnp.float32)
        mean = jax.random.normal(k_m, (F,), dtype=jnp.float32)
        std = jax.random.uniform(k_s, (F,), dtype=jnp.float32,
                                 minval=0.5, maxval=2.0)
        out = jax.block_until_ready(input_norm(x, mean, std))
        ref = input_norm_reference(x, mean, std)
        assert out.shape == (N, F)
        assert jnp.allclose(out, ref, atol=1e-5, rtol=1e-5), (N, F)

    keys = jax.random.split(key, 3)
    run_case(keys[0], 256, 32)   # tabular shape -> lane-dense folded path (L=128)
    run_case(keys[1], 40, 128)   # F already lane-aligned, ragged last row block
    run_case(keys[2], 24, 20)    # fallback path (F does not divide 128)

    print("KERNEL_OK")
</pallas_src>

<mosaic_0001>
module attributes {stable_mosaic.version = 11 : i64} {
  func.func @_input_norm_kernel(%arg0: i32, %arg1: memref<2x128xf32, #tpu.memory_space<vmem>>, %arg2: memref<32x128xf32, #tpu.memory_space<vmem>>, %arg3: memref<32x128xf32, #tpu.memory_space<vmem>>) attributes {dimension_semantics = [#tpu.dimension_semantics<parallel>], iteration_bounds = array<i64: 2>, scalar_prefetch = 0 : i64, scratch_operands = 0 : i64, tpu.core_type = #tpu.core_type<tc>, window_params = [{pipeline_mode = #tpu.pipeline_mode<synchronous>, transform_indices = @transform_0, window_bounds = array<i64: 2, 128>}, {transform_indices = @transform_1, window_bounds = array<i64: 32, 128>}, {transform_indices = @transform_2, window_bounds = array<i64: 32, 128>}]} {
    %c0 = arith.constant 0 : index
    %c0_0 = arith.constant 0 : index
    %0 = vector.load %arg1[%c0, %c0_0] : memref<2x128xf32, #tpu.memory_space<vmem>>, vector<2x128xf32>
    %1 = vector.extract_strided_slice %0 {offsets = [0, 0], sizes = [1, 128], strides = [1, 1]} : vector<2x128xf32> to vector<1x128xf32>
    %2 = vector.extract_strided_slice %0 {offsets = [1, 0], sizes = [1, 128], strides = [1, 1]} : vector<2x128xf32> to vector<1x128xf32>
    %c0_1 = arith.constant 0 : index
    %c0_2 = arith.constant 0 : index
    %3 = vector.load %arg2[%c0_1, %c0_2] : memref<32x128xf32, #tpu.memory_space<vmem>>, vector<32x128xf32>
    %4 = vector.broadcast %1 : vector<1x128xf32> to vector<32x128xf32>
    %5 = arith.mulf %3, %4 : vector<32x128xf32>
    %6 = vector.broadcast %2 : vector<1x128xf32> to vector<32x128xf32>
    %7 = arith.addf %5, %6 : vector<32x128xf32>
    %c0_3 = arith.constant 0 : index
    %c0_4 = arith.constant 0 : index
    %8 = vector.load %arg3[%c0_3, %c0_4] : memref<32x128xf32, #tpu.memory_space<vmem>>, vector<32x128xf32>
    tpu.vector_store %arg3[%c0_3, %c0_4], %7 {strides = array<i32>} : memref<32x128xf32, #tpu.memory_space<vmem>>, vector<32x128xf32>,
    return
  }
  func.func @transform_0(%arg0: i32) -> (i32, i32) {
    %c0_i32 = arith.constant 0 : i32
    %c0_i32_0 = arith.constant 0 : i32
    %c0_i32_1 = arith.constant 0 : i32
    return %c0_i32, %c0_i32_0 : i32, i32
  }
  func.func @transform_1(%arg0: i32) -> (i32, i32) {
    %c0_i32 = arith.constant 0 : i32
    %c0_i32_0 = arith.constant 0 : i32
    return %arg0, %c0_i32 : i32, i32
  }
  func.func @transform_2(%arg0: i32) -> (i32, i32) {
    %c0_i32 = arith.constant 0 : i32
    %c0_i32_0 = arith.constant 0 : i32
    return %arg0, %c0_i32 : i32, i32
  }
}

</mosaic_0001>

<llo_original>
// kernel: tpu_custom_call.1
$region0: #{tpu_custom_call.1}
  #allocation0 [shape = 'u32[]', space=smem, size = 0x4, offset = 0x4, fixed_abs, tag = 'smem constant byte address 0x4 - core index']
  #allocation1 [shape = 'u32[144,128]{1,0:T(1,128)}', space=vmem, size = 0x12000, scoped, tag = 'internal scratch']
  %s0 = inlined_call_operand.hbm [shape: f32[2,128], index: 0, kind: input, shape index: {}]
  %s1 = inlined_call_operand.hbm [shape: f32[64,128], index: 1, kind: input, shape index: {}]
  %s2 = inlined_call_operand.hbm [shape: f32[64,128], index: 2, kind: output, shape index: {}]
  %s3 = sld [smem:[#allocation0]]
  $region49: #{tpu_custom_call.1} parent=0
    _
  %s5 = ssub.s32 1, %s3
  %s6 = scalar_select 0, %s5, %s3
  $region1: #{tpu_custom_call.1} parent=0
    #allocation2 [shape = 'u8[1024]{0}', space=vmem, size = 0x400, scoped, tag = 'input window, operand 0, single buffered']
    #allocation3 [shape = 's32[2]{0}', space=sflag, size = 0x8, scoped, tag = 'scoped memory for tpu_custom_call.1']
    #allocation4 [shape = 's32[2]{0}', space=sflag, size = 0x8, scoped, tag = 'scoped memory for tpu_custom_call.1']
    #allocation5 [shape = 'u8[32768]{0}', space=vmem, size = 0x8000, scoped, tag = 'input window, operand 1']
    #allocation6 [shape = 's32[2]{0}', space=sflag, size = 0x8, scoped, tag = 'scoped memory for tpu_custom_call.1']
    #allocation7 [shape = 'u8[32768]{0}', space=vmem, size = 0x8000, scoped, tag = 'output window, operand 0']
    %7 = vsyncpa [#allocation3], 0
    %8 = vsyncpa [#allocation6], 0
    %s9 = scalar_lea.sflag [#allocation6], 1
    %10 = vsyncpa %s9, 0
    %11 = vsyncpa [#allocation4], 0
    %s12 = scalar_lea.sflag [#allocation4], 1
    %13 = vsyncpa %s12, 0
    loop: start=0, step=1, limit=4
    $region2: #{tpu_custom_call.1} parent=1 // loop_pre_header
      _
    $region3: #{tpu_custom_call.1} parent=1 // loop_header
      %s15 = sphi 0, %s19
      %p16 = scmp.ge.s32.totalorder %s15, 4
      %s23 = sphi 0, %s23
      %s25 = sphi 0, %s23
      %s26 = sphi 0, %s25
      %s40 = sphi 0, %s26
      %s46 = sphi 0, %s48
      %s49 = sphi 0, %s46
      %s50 = sphi 0, %s49
      %s66 = sphi 0, %s50
      %s72 = sphi 0, %s74
      %s75 = sphi 0, %s72
      %s76 = sphi 0, %s75
      %s92 = sphi 0, %s76
    $region4: #{tpu_custom_call.1} parent=1 // loop_header_branch
      %18 = sbr.rel (%p16) target = $region8
    $region5: #{tpu_custom_call.1} parent=1 // loop_body
      %s20 = ssub.s32 %s15, 1
      %s21 = ssub.s32 %s15, 2
      %s22 = sadd.s32 %s15, 1
      %s24 = sadd.s32 %s23, 1
      %p27 = scmp.eq.s32.totalorder %s15, 1
      %p28 = scmp.ne.s32.totalorder %s23, %s25
      %p29 = scmp.eq.s32.totalorder %s15, 0
      %p30 = por %p28, %p29
      %p31 = scmp.ne.s32.totalorder %s23, %s25
      %p32 = scmp.eq.s32.totalorder %s20, 1
      %p33 = por %p31, %p32
      %p34 = scmp.ne.s32.totalorder %s25, %s26
      %p35 = scmp.eq.s32.totalorder %s20, 0
      %p36 = por %p34, %p35
      %p37 = scmp.ne.s32.totalorder %s25, %s26
      %p38 = scmp.eq.s32.totalorder %s21, 1
      %p39 = por %p37, %p38
      %p41 = scmp.ne.s32.totalorder %s26, %s40
      %p42 = scmp.eq.s32.totalorder %s21, 0
      %p43 = por %p41, %p42
      %s44 = ssub.s32 %s15, %s22
      %p45 = scmp.eq.s32.totalorder %s44, 0
      %s47 = sadd.s32 %s46, 1
      %s48 = scalar_select %p45, %s46, %s47
      %p51 = pneg %p45
      %p52 = scmp.eq.s32.totalorder %s15, 1
      %p53 = por %p51, %p52
      %p54 = scmp.ne.s32.totalorder %s46, %s49
      %p55 = scmp.eq.s32.totalorder %s15, 0
      %p56 = por %p54, %p55
      %p57 = scmp.ne.s32.totalorder %s46, %s49
      %p58 = scmp.eq.s32.totalorder %s20, 1
      %p59 = por %p57, %p58
      %p60 = scmp.ne.s32.totalorder %s49, %s50
      %p61 = scmp.eq.s32.totalorder %s20, 0
      %p62 = por %p60, %p61
      %p63 = scmp.ne.s32.totalorder %s49, %s50
      %p64 = scmp.eq.s32.totalorder %s21, 1
      %p65 = por %p63, %p64
      %p67 = scmp.ne.s32.totalorder %s50, %s66
      %p68 = scmp.eq.s32.totalorder %s21, 0
      %p69 = por %p67, %p68
      %s70 = ssub.s32 %s15, %s22
      %p71 = scmp.eq.s32.totalorder %s70, 0
      %s73 = sadd.s32 %s72, 1
      %s74 = scalar_select %p71, %s72, %s73
      %p77 = pneg %p71
      %p78 = scmp.eq.s32.totalorder %s15, 1
      %p79 = por %p77, %p78
      %p80 = scmp.ne.s32.totalorder %s72, %s75
      %p81 = scmp.eq.s32.totalorder %s15, 0
      %p82 = por %p80, %p81
      %p83 = scmp.ne.s32.totalorder %s72, %s75
      %p84 = scmp.eq.s32.totalorder %s20, 1
      %p85 = por %p83, %p84
      %p86 = scmp.ne.s32.totalorder %s75, %s76
      %p87 = scmp.eq.s32.totalorder %s20, 0
      %p88 = por %p86, %p87
      %p89 = scmp.ne.s32.totalorder %s75, %s76
      %p90 = scmp.eq.s32.totalorder %s21, 1
      %p91 = por %p89, %p90
      %p93 = scmp.ne.s32.totalorder %s76, %s92
      %p94 = scmp.eq.s32.totalorder %s21, 0
      %p95 = por %p93, %p94
      %p96 = scmp.le.s32.totalorder 1, %s15
      %p97 = scmp.lt.s32.totalorder %s15, 3
      %p98 = pnand %p96, %p97
      %p99 = pneg %p98
      // Predicated region
      $region9: #{tpu_custom_call.1} parent=5 // pred_check
        _
      $region10: #{tpu_custom_call.1} parent=5 // pred_check_branch
        %101 = sbr.rel (%p98) target = $region12
      $region11: #{tpu_custom_call.1} parent=5 // pred_region
        %s102 = ssub.s32 %s15, 1
        // Predicated region
        $region13: #{tpu_custom_call.1} parent=11 // pred_check
          %p103 = pneg %p36
        $region14: #{tpu_custom_call.1} parent=11 // pred_check_branch
          %105 = sbr.rel (%p103) target = $region16
        $region15: #{tpu_custom_call.1} parent=11 // pred_region
          %s107 = ssub.s32 32, 32
          %108 = vsyncadd [#allocation3], %s107
          %s110 = sshll.u32 [#allocation2], 4
          %s111 = int_to_ptr.vmem [resolvable:$true] %s110
          %113 = dma.hbm_to_vmem [thread:$0]  %s0, 32, %s111, [#allocation3]
        $region16: #{tpu_custom_call.1} parent=11 // pred_fallthru
          _
      $region12: #{tpu_custom_call.1} parent=5 // pred_fallthru
        _
      %p114 = scmp.lt.s32.totalorder %s15, 2
      // Predicated region
      $region17: #{tpu_custom_call.1} parent=5 // pred_check
        %p115 = pneg %p114
      $region18: #{tpu_custom_call.1} parent=5 // pred_check_branch
        %117 = sbr.rel (%p115) target = $region20
      $region19: #{tpu_custom_call.1} parent=5 // pred_region
        // Predicated region
        $region21: #{tpu_custom_call.1} parent=19 // pred_check
          %p118 = pneg %p56
        $region22: #{tpu_custom_call.1} parent=19 // pred_check_branch
          %120 = sbr.rel (%p118) target = $region24
        $region23: #{tpu_custom_call.1} parent=19 // pred_region
          %s121 = sand.u32 %s46, 1
          %s122 = scalar_lea.sflag [#allocation6], %s121
          %s123 = sand.u32 %s46, 1
          %s124 = smul.addr %s123, 32
          %s125 = scalar_lea.vmem [#allocation5], %s124
          %s126 = smul.u32 4, %s15
          %s128 = ssub.s32 512, 512
          %129 = vsyncadd %s122, %s128
          %s130 = smul.addr %s126, 128
          %s131 = scalar_lea.hbm %s1, %s130
          %s132 = sshll.u32 %s125, 4
          %s133 = int_to_ptr.vmem [resolvable:$true] %s132
          %138 = dma.hbm_to_vmem [thread:$0]  %s131, 512, %s133, %s122, 128, 128, 8
        $region24: #{tpu_custom_call.1} parent=19 // pred_fallthru
          _
      $region20: #{tpu_custom_call.1} parent=5 // pred_fallthru
        _
      %p139 = scmp.le.s32.totalorder 1, %s15
      %p140 = scmp.lt.s32.totalorder %s15, 3
      %p141 = pnand %p139, %p140
      %p142 = pneg %p141
      // Predicated region
      $region25: #{tpu_custom_call.1} parent=5 // pred_check
        _
      $region26: #{tpu_custom_call.1} parent=5 // pred_check_branch
        %144 = sbr.rel (%p141) target = $region28
      $region27: #{tpu_custom_call.1} parent=5 // pred_region
        %s145 = ssub.s32 %s15, 1
        // Predicated region
        $region29: #{tpu_custom_call.1} parent=27 // pred_check
          %p146 = pneg %p36
        $region30: #{tpu_custom_call.1} parent=27 // pred_check_branch
          %148 = sbr.rel (%p146) target = $region32
        $region31: #{tpu_custom_call.1} parent=27 // pred_region
          %149 = dma.done [#allocation3], 32
        $region32: #{tpu_custom_call.1} parent=27 // pred_fallthru
          _
        %s150 = sand.u32 %s49, 1
        %s151 = scalar_lea.sflag [#allocation6], %s150
        %s152 = sand.u32 %s49, 1
        %s153 = smul.addr %s152, 32
        %s154 = scalar_lea.vmem [#allocation5], %s153
        // Predicated region
        $region33: #{tpu_custom_call.1} parent=27 // pred_check
          %p155 = pneg %p62
        $region34: #{tpu_custom_call.1} parent=27 // pred_check_branch
          %157 = sbr.rel (%p155) target = $region36
        $region35: #{tpu_custom_call.1} parent=27 // pred_region
          %158 = dma.done %s151, 512
        $region36: #{tpu_custom_call.1} parent=27 // pred_fallthru
          _
        %p159 = pneg %p36
        %p160 = pneg %p33
        %s161 = sand.u32 %s49, 1
        %s162 = scalar_lea.sflag [#allocation6], %s161
        %s163 = sand.u32 %s49, 1
        %s164 = smul.addr %s163, 32
        %s165 = scalar_lea.vmem [#allocation5], %s164
        %p166 = pneg %p62
        %p167 = pneg %p59
        %p168 = pneg %p88
        %p169 = pneg %p85
        %s170 = sand.u32 %s75, 1
        %s171 = scalar_lea.sflag [#allocation4], %s170
        %s172 = sand.u32 %s75, 1
        %s173 = smul.addr %s172, 32
        %s174 = scalar_lea.vmem [#allocation7], %s173
        %s175 = smul.u32 4, %s20
        %s176 = smul.u32 4, %s20
        %v177 = vld [vmem:[#allocation2] sm:$0x3]
        %v178 = vld [vmem:[%s154] sm:$0xff]
        %v179 = vld [vmem:[%s154 + $0x8] sm:$0xff]
        %v180 = vld [vmem:[%s154 + $0x10] sm:$0xff]
        %v181 = vld [vmem:[%s154 + $0x18] sm:$0xff]
        %v182 = vlaneseq
        %v183 = vshrl.u32 %v182, 7
        %v184 = vsub.s32 0, %v183
        %v185 = vrot.slane %v177, %v184
        %v186 = vmul.f32 %v178, %v185
        %v187 = vmul.f32 %v179, %v185
        %v188 = vmul.f32 %v180, %v185
        %v189 = vmul.f32 %v181, %v185
        %v190 = vlaneseq
        %v191 = vshrl.u32 %v190, 7
        %v192 = vsub.s32 1, %v191
        %v193 = vrot.slane %v177, %v192
        %v194 = vadd.f32 %v186, %v193
        %v195 = vadd.f32 %v187, %v193
        %v196 = vadd.f32 %v188, %v193
        %v197 = vadd.f32 %v189, %v193
        %198 = vst [vmem:[%s174] sm:$0xff] %v194
        %199 = vst [vmem:[%s174 + $0x8] sm:$0xff] %v195
        %200 = vst [vmem:[%s174 + $0x10] sm:$0xff] %v196
        %201 = vst [vmem:[%s174 + $0x18] sm:$0xff] %v197
        %s202 = sand.u32 %s75, 1
        %s203 = scalar_lea.sflag [#allocation4], %s202
        %s204 = sand.u32 %s75, 1
        %s205 = smul.addr %s204, 32
        %s206 = scalar_lea.vmem [#allocation7], %s205
        // Predicated region
        $region37: #{tpu_custom_call.1} parent=27 // pred_check
          %p207 = pneg %p85
        $region38: #{tpu_custom_call.1} parent=27 // pred_check_branch
          %209 = sbr.rel (%p207) target = $region40
        $region39: #{tpu_custom_call.1} parent=27 // pred_region
          %s210 = smul.u32 4, %s20
          %s212 = ssub.s32 512, 512
          %213 = vsyncadd %s203, %s212
          %s214 = smul.addr %s210, 128
          %s215 = scalar_lea.hbm %s2, %s214
          %s216 = sshll.u32 %s206, 4
          %s217 = int_to_ptr.vmem [resolvable:$true] %s216
          %222 = dma.vmem_to_hbm [thread:$0]  %s217, 512, %s215, %s203, 128, 128, 8
        $region40: #{tpu_custom_call.1} parent=27 // pred_fallthru
          _
      $region28: #{tpu_custom_call.1} parent=5 // pred_fallthru
        _
      %p223 = scmp.le.s32.totalorder 2, %s15
      // Predicated region
      $region41: #{tpu_custom_call.1} parent=5 // pred_check
        %p224 = pneg %p223
      $region42: #{tpu_custom_call.1} parent=5 // pred_check_branch
        %226 = sbr.rel (%p224) target = $region44
      $region43: #{tpu_custom_call.1} parent=5 // pred_region
        %s227 = ssub.s32 %s15, 2
        // Predicated region
        $region45: #{tpu_custom_call.1} parent=43 // pred_check
          %p228 = pneg %p91
        $region46: #{tpu_custom_call.1} parent=43 // pred_check_branch
          %230 = sbr.rel (%p228) target = $region48
        $region47: #{tpu_custom_call.1} parent=43 // pred_region
          %s231 = sand.u32 %s76, 1
          %s232 = scalar_lea.sflag [#allocation4], %s231
          %s233 = sand.u32 %s76, 1
          %s234 = smul.addr %s233, 32
          %s235 = scalar_lea.vmem [#allocation7], %s234
          %236 = dma.done %s232, 512
        $region48: #{tpu_custom_call.1} parent=43 // pred_fallthru
          _
      $region44: #{tpu_custom_call.1} parent=5 // pred_fallthru
        _
    $region6: #{tpu_custom_call.1} parent=1 // loop_footer
      %s19 = sadd.s32 1, %s15
    $region7: #{tpu_custom_call.1} parent=1 // loop_footer_branch
      %14 = sbr.rel target = $region3
    $region8: #{tpu_custom_call.1} parent=1 // loop_exit
      _
    %237 = vsyncpa [#allocation3], 1
    %s238 = scalar_lea.sflag [#allocation3], 1
    %239 = vsyncpa %s238, 1
    %240 = vsyncpa [#allocation6], 1
    %s241 = scalar_lea.sflag [#allocation6], 1
    %242 = vsyncpa %s241, 1
    %243 = vsyncpa [#allocation4], 1
    %s244 = scalar_lea.sflag [#allocation4], 1
    %245 = vsyncpa %s244, 1

</llo_original>
